<compile_context>
chip_gen: v6e
topology: v6e:2x2x1
jax: 0.10.0
libtpu: 0.0.40
codegen_flags: <defaults>
</compile_context>

<pallas_src>
import functools
import itertools

import numpy as np
import jax
import jax.numpy as jnp
from jax.experimental import pallas as pl
from jax.experimental.pallas import tpu as pltpu

try:
    from scipy.optimize import linear_sum_assignment as _scipy_lsa
except Exception:  # pragma: no cover - scipy optional
    _scipy_lsa = None

_EPS = 1e-7        # guards inter/union and enclosing-area divisions
_NEG = -1e30       # logit padding value (softmax weight -> 0 on padded classes)


def _round_up(x, m):
    return ((x + m - 1) // m) * m


def _cost_kernel(logits_ref, onehot_ref, pbox_ref, tboxT_ref, out_ref,
                 *, bbox_w, giou_w):
    # ---- class cost: class_w * (-softmax(logits)[:, tgt]) via MXU one-hot matmul ----
    # onehot_ref already carries (-class_w) folded in (bf16), padded classes/targets = 0.
    logits = logits_ref[0]                                   # [Qt, Cp] f32
    m = jnp.max(logits, axis=-1, keepdims=True)
    e = jnp.exp(logits - m)                                  # EUP
    prob = e * pl.reciprocal(jnp.sum(e, axis=-1, keepdims=True), approx=True)
    class_term = jnp.dot(prob.astype(jnp.bfloat16), onehot_ref[0],
                         preferred_element_type=jnp.float32)  # [Qt, Tp]

    # ---- box costs (cxcywh), pairwise via (Qt,1) x (1,Tp) lane broadcasts ----
    pb = pbox_ref[0]                                         # [Qt, 4]
    tb = tboxT_ref[0]                                        # [4, Tp]
    pcx, pcy, pw, ph = pb[:, 0:1], pb[:, 1:2], pb[:, 2:3], pb[:, 3:4]   # [Qt, 1]
    tcx, tcy, tw, th = tb[0:1, :], tb[1:2, :], tb[2:3, :], tb[3:4, :]   # [1, Tp]

    # L1 cdist
    l1 = (jnp.abs(pcx - tcx) + jnp.abs(pcy - tcy)
          + jnp.abs(pw - tw) + jnp.abs(ph - th))             # [Qt, Tp]

    # corners / areas on narrow shapes (hoisted out of the pairwise section)
    hpw, hph = pw * 0.5, ph * 0.5
    htw, hth = tw * 0.5, th * 0.5
    px0, px1 = pcx - hpw, pcx + hpw
    py0, py1 = pcy - hph, pcy + hph
    tx0, tx1 = tcx - htw, tcx + htw
    ty0, ty1 = tcy - hth, tcy + hth
    area_p = pw * ph                                          # [Qt, 1]
    area_t = tw * th                                          # [1, Tp]

    # pairwise IoU
    iw = jnp.maximum(jnp.minimum(px1, tx1) - jnp.maximum(px0, tx0), 0.0)
    ih = jnp.maximum(jnp.minimum(py1, ty1) - jnp.maximum(py0, ty0), 0.0)
    inter = iw * ih                                           # [Qt, Tp]
    union = (area_p + area_t) - inter

    # pairwise enclosing box
    cw = jnp.maximum(px1, tx1) - jnp.minimum(px0, tx0)
    ch = jnp.maximum(py1, ty1) - jnp.minimum(py0, ty0)
    area_c = cw * ch

    rcp_union = pl.reciprocal(union + _EPS, approx=True)      # EUP
    rcp_c = pl.reciprocal(area_c + _EPS, approx=True)         # EUP
    one_minus_giou = (1.0 - inter * rcp_union) + (area_c - union) * rcp_c

    cost = class_term + bbox_w * l1 + giou_w * one_minus_giou
    out_ref[0] = cost.astype(out_ref.dtype)


def _cost_matrix_pallas(logits_pad, onehot_neg, boxes_pad, tboxT_pad,
                        bbox_w, giou_w, q_tile):
    B, Q_pad, C_pad = logits_pad.shape
    T_pad = onehot_neg.shape[-1]
    n_q_tiles = Q_pad // q_tile

    kernel = functools.partial(_cost_kernel, bbox_w=bbox_w, giou_w=giou_w)

    # Advisory cost hint for the XLA scheduler.
    flops = int(B * Q_pad * (2 * C_pad * T_pad + 40 * T_pad + 6 * C_pad))
    transc = int(B * Q_pad * (C_pad + 1 + 2 * T_pad))
    bytes_acc = int(4 * B * (Q_pad * C_pad + Q_pad * 4 + 4 * T_pad + Q_pad * T_pad)
                    + 2 * B * C_pad * T_pad)

    return pl.pallas_call(
        kernel,
        out_shape=jax.ShapeDtypeStruct((B, Q_pad, T_pad), jnp.float32),
        grid=(B, n_q_tiles),
        in_specs=[
            pl.BlockSpec((1, q_tile, C_pad), lambda b, q: (b, q, 0)),   # logits
            pl.BlockSpec((1, C_pad, T_pad), lambda b, q: (b, 0, 0)),    # -class_w * onehot
            pl.BlockSpec((1, q_tile, 4), lambda b, q: (b, q, 0)),       # pred boxes
            pl.BlockSpec((1, 4, T_pad), lambda b, q: (b, 0, 0)),        # tgt boxes^T
        ],
        out_specs=pl.BlockSpec((1, q_tile, T_pad), lambda b, q: (b, q, 0)),
        compiler_params=pltpu.CompilerParams(
            dimension_semantics=("parallel", "parallel")),
        cost_estimate=pl.CostEstimate(flops=flops, transcendentals=transc,
                                      bytes_accessed=bytes_acc),
    )(logits_pad, onehot_neg, boxes_pad, tboxT_pad)


def _linear_sum_assignment_np(cost):
    """Exact assignment for tiny rectangular cost matrices (rows >= cols). Fallback."""
    cost = np.asarray(cost, dtype=np.float64)
    n_rows, n_cols = cost.shape
    if n_cols == 0:
        return (np.zeros((0,), dtype=np.int64), np.zeros((0,), dtype=np.int64))
    best_rows, best_cost = None, np.inf
    cols = list(range(n_cols))
    for rows in itertools.permutations(range(n_rows), n_cols):
        c = cost[list(rows), cols].sum()
        if c < best_cost:
            best_cost, best_rows = c, rows
    row_ind = np.asarray(best_rows, dtype=np.int64)
    col_ind = np.arange(n_cols, dtype=np.int64)
    order = np.argsort(row_ind)
    return row_ind[order], col_ind[order]


class HungarianMatcherPallas:
    def __init__(self, class_weight=1.0, bbox_weight=1.0, giou_weight=1.0):
        self.class_weight = float(class_weight)
        self.bbox_weight = float(bbox_weight)
        self.giou_weight = float(giou_weight)

    def __call__(self, pred, gt):
        pred_logits = pred['pred_logits']          # [B, Q, C+1]
        pred_boxes = pred['pred_boxes']            # [B, Q, 4]
        bs, num_queries, num_cls = pred_logits.shape

        sizes = [int(v['boxes'].shape[0]) for v in gt]
        max_t = max(sizes) if sizes else 0

        # ---- padding for lane/sublane density ----
        T_pad = max(_round_up(max(max_t, 1), 128), 128)   # targets -> full lanes
        C_pad = _round_up(num_cls, 128)                   # classes -> full lanes
        q_tile = min(256, _round_up(num_queries, 8))      # multiple of 8 sublanes
        Q_pad = _round_up(num_queries, q_tile)

        logits_pad = jnp.pad(
            pred_logits.astype(jnp.float32),
            ((0, 0), (0, Q_pad - num_queries), (0, C_pad - num_cls)),
            constant_values=_NEG)                          # padded classes -> prob 0
        boxes_pad = jnp.pad(
            pred_boxes.astype(jnp.float32),
            ((0, 0), (0, Q_pad - num_queries), (0, 0)))

        # Per-batch (negated, class_w-scaled) one-hot [C_pad, T_pad] and boxes^T [4, T_pad].
        onehot_list, tboxT_list = [], []
        for v in gt:
            labels = v['labels']
            tboxes = v['boxes'].astype(jnp.float32)
            t = int(labels.shape[0])
            oh = jax.nn.one_hot(labels, C_pad, dtype=jnp.float32).T      # [C_pad, t]
            oh = (-self.class_weight) * oh
            oh = jnp.pad(oh, ((0, 0), (0, T_pad - t)))
            onehot_list.append(oh.astype(jnp.bfloat16))
            tboxT_list.append(jnp.pad(tboxes.T, ((0, 0), (0, T_pad - t))))
        onehot_neg = jnp.stack(onehot_list)                               # [B, C_pad, T_pad]
        tboxT_pad = jnp.stack(tboxT_list)                                 # [B, 4, T_pad]

        C = _cost_matrix_pallas(logits_pad, onehot_neg, boxes_pad, tboxT_pad,
                                self.bbox_weight, self.giou_weight, q_tile)
        C_np = np.asarray(jax.block_until_ready(C))        # [B, Q_pad, T_pad]

        # TODO(synk): Hungarian assignment is sequential data-dependent control flow -> host.
        indices = []
        for b, t in enumerate(sizes):
            block = C_np[b, :num_queries, :t]
            if _scipy_lsa is not None:
                ri, ci = _scipy_lsa(block)
            else:
                ri, ci = _linear_sum_assignment_np(block)
            indices.append((np.asarray(ri, dtype=np.int64),
                            np.asarray(ci, dtype=np.int64)))
        return indices


if __name__ == "__main__":
    key = jax.random.PRNGKey(0)
    bs, num_queries, num_classes = 2, 8, 6          # logits last dim = num_classes + 1

    k1, k2, k3, k4 = jax.random.split(key, 4)
    pred_logits = jax.random.normal(k1, (bs, num_queries, num_classes + 1),
                                    dtype=jnp.float32)
    # cxcywh boxes in a safe range
    pred_cxcy = 0.2 + 0.6 * jax.random.uniform(k2, (bs, num_queries, 2))
    pred_wh = 0.1 + 0.2 * jax.random.uniform(k3, (bs, num_queries, 2))
    pred_boxes = jnp.concatenate([pred_cxcy, pred_wh], axis=-1).astype(jnp.float32)

    sizes = [3, 2]
    gt = []
    keys = jax.random.split(k4, 2 * len(sizes))
    for b, n in enumerate(sizes):
        kl, kb = keys[2 * b], keys[2 * b + 1]
        labels = jax.random.randint(kl, (n,), 0, num_classes, dtype=jnp.int32)
        cxcy = 0.2 + 0.6 * jax.random.uniform(kb, (n, 2))
        wh = 0.1 + 0.2 * jax.random.uniform(jax.random.fold_in(kb, 7), (n, 2))
        boxes = jnp.concatenate([cxcy, wh], axis=-1).astype(jnp.float32)
        gt.append({'labels': labels, 'boxes': boxes})

    matcher = HungarianMatcherPallas(class_weight=1.0, bbox_weight=1.0,
                                     giou_weight=1.0)
    indices = matcher({'pred_logits': pred_logits, 'pred_boxes': pred_boxes}, gt)

    # basic sanity: one (row, col) pair per batch element, correct lengths
    assert len(indices) == bs
    for (ri, ci), n in zip(indices, sizes):
        assert ri.shape == (n,) and ci.shape == (n,)
        assert ri.dtype == np.int64 and ci.dtype == np.int64
        assert len(set(ri.tolist())) == n            # rows are a valid matching

    print("KERNEL_OK")
</pallas_src>

<mosaic_0001>
module attributes {stable_mosaic.version = 11 : i64} {
  func.func @_cost_kernel(%arg0: i32, %arg1: i32, %arg2: memref<1x8x128xf32, #tpu.memory_space<vmem>>, %arg3: memref<1x128x128xbf16, #tpu.memory_space<vmem>>, %arg4: memref<1x8x4xf32, #tpu.memory_space<vmem>>, %arg5: memref<1x4x128xf32, #tpu.memory_space<vmem>>, %arg6: memref<1x8x128xf32, #tpu.memory_space<vmem>>) attributes {dimension_semantics = [#tpu.dimension_semantics<parallel>, #tpu.dimension_semantics<parallel>], iteration_bounds = array<i64: 2, 1>, scalar_prefetch = 0 : i64, scratch_operands = 0 : i64, tpu.core_type = #tpu.core_type<tc>, window_params = [{transform_indices = @transform_0, window_bounds = array<i64: 1, 8, 128>}, {transform_indices = @transform_1, window_bounds = array<i64: 1, 128, 128>}, {transform_indices = @transform_2, window_bounds = array<i64: 1, 8, 4>}, {transform_indices = @transform_3, window_bounds = array<i64: 1, 4, 128>}, {transform_indices = @transform_4, window_bounds = array<i64: 1, 8, 128>}]} {
    %c0 = arith.constant 0 : index
    %c0_0 = arith.constant 0 : index
    %c0_1 = arith.constant 0 : index
    %0 = vector.load %arg2[%c0, %c0_0, %c0_1] : memref<1x8x128xf32, #tpu.memory_space<vmem>>, vector<1x8x128xf32>
    %1 = vector.shape_cast %0 : vector<1x8x128xf32> to vector<8x128xf32>
    %cst = arith.constant dense<0xFF800000> : vector<8xf32>
    %2 = vector.multi_reduction <maximumf>, %1, %cst [1] : vector<8x128xf32> to vector<8xf32>
    %3 = vector.shape_cast %2 : vector<8xf32> to vector<8x1xf32>
    %4 = vector.broadcast %3 : vector<8x1xf32> to vector<8x128xf32>
    %5 = arith.subf %1, %4 : vector<8x128xf32>
    %6 = math.exp %5 : vector<8x128xf32>
    %cst_2 = arith.constant dense<0.000000e+00> : vector<8xf32>
    %7 = vector.multi_reduction <add>, %6, %cst_2 [1] : vector<8x128xf32> to vector<8xf32>
    %8 = vector.shape_cast %7 : vector<8xf32> to vector<8x1xf32>
    %9 = tpu.reciprocal %8 {approx = true} : vector<8x1xf32> -> vector<8x1xf32>
    %10 = vector.broadcast %9 : vector<8x1xf32> to vector<8x128xf32>
    %11 = arith.mulf %6, %10 : vector<8x128xf32>
    %12 = arith.truncf %11 : vector<8x128xf32> to vector<8x128xbf16>
    %c0_3 = arith.constant 0 : index
    %c0_4 = arith.constant 0 : index
    %c0_5 = arith.constant 0 : index
    %13 = vector.load %arg3[%c0_3, %c0_4, %c0_5] : memref<1x128x128xbf16, #tpu.memory_space<vmem>>, vector<1x128x128xbf16>
    %14 = vector.shape_cast %13 : vector<1x128x128xbf16> to vector<128x128xbf16>
    %cst_6 = arith.constant dense<0.000000e+00> : vector<8x128xf32>
    %15 = tpu.matmul %12, %14, %cst_6 {dimension_numbers = #tpu.dot_dimension_numbers<[1], [0], [0], [1], [0, 0, 1, 1], [], []>} : vector<8x128xbf16>, vector<128x128xbf16>, vector<8x128xf32> -> vector<8x128xf32>
    %c0_7 = arith.constant 0 : index
    %c0_8 = arith.constant 0 : index
    %c0_9 = arith.constant 0 : index
    %16 = vector.load %arg4[%c0_7, %c0_8, %c0_9] : memref<1x8x4xf32, #tpu.memory_space<vmem>>, vector<1x8x4xf32>
    %17 = vector.shape_cast %16 : vector<1x8x4xf32> to vector<8x4xf32>
    %c0_10 = arith.constant 0 : index
    %c0_11 = arith.constant 0 : index
    %c0_12 = arith.constant 0 : index
    %18 = vector.load %arg5[%c0_10, %c0_11, %c0_12] : memref<1x4x128xf32, #tpu.memory_space<vmem>>, vector<1x4x128xf32>
    %19 = vector.shape_cast %18 : vector<1x4x128xf32> to vector<4x128xf32>
    %20 = vector.extract_strided_slice %17 {offsets = [0, 0], sizes = [8, 1], strides = [1, 1]} : vector<8x4xf32> to vector<8x1xf32>
    %21 = vector.extract_strided_slice %17 {offsets = [0, 1], sizes = [8, 1], strides = [1, 1]} : vector<8x4xf32> to vector<8x1xf32>
    %22 = vector.extract_strided_slice %17 {offsets = [0, 2], sizes = [8, 1], strides = [1, 1]} : vector<8x4xf32> to vector<8x1xf32>
    %23 = vector.extract_strided_slice %17 {offsets = [0, 3], sizes = [8, 1], strides = [1, 1]} : vector<8x4xf32> to vector<8x1xf32>
    %24 = vector.extract_strided_slice %19 {offsets = [0, 0], sizes = [1, 128], strides = [1, 1]} : vector<4x128xf32> to vector<1x128xf32>
    %25 = vector.extract_strided_slice %19 {offsets = [1, 0], sizes = [1, 128], strides = [1, 1]} : vector<4x128xf32> to vector<1x128xf32>
    %26 = vector.extract_strided_slice %19 {offsets = [2, 0], sizes = [1, 128], strides = [1, 1]} : vector<4x128xf32> to vector<1x128xf32>
    %27 = vector.extract_strided_slice %19 {offsets = [3, 0], sizes = [1, 128], strides = [1, 1]} : vector<4x128xf32> to vector<1x128xf32>
    %28 = vector.broadcast %20 : vector<8x1xf32> to vector<8x128xf32>
    %29 = vector.broadcast %24 : vector<1x128xf32> to vector<8x128xf32>
    %30 = arith.subf %28, %29 : vector<8x128xf32>
    %31 = math.absf %30 : vector<8x128xf32>
    %32 = vector.broadcast %21 : vector<8x1xf32> to vector<8x128xf32>
    %33 = vector.broadcast %25 : vector<1x128xf32> to vector<8x128xf32>
    %34 = arith.subf %32, %33 : vector<8x128xf32>
    %35 = math.absf %34 : vector<8x128xf32>
    %36 = arith.addf %31, %35 : vector<8x128xf32>
    %37 = vector.broadcast %22 : vector<8x1xf32> to vector<8x128xf32>
    %38 = vector.broadcast %26 : vector<1x128xf32> to vector<8x128xf32>
    %39 = arith.subf %37, %38 : vector<8x128xf32>
    %40 = math.absf %39 : vector<8x128xf32>
    %41 = arith.addf %36, %40 : vector<8x128xf32>
    %42 = vector.broadcast %23 : vector<8x1xf32> to vector<8x128xf32>
    %43 = vector.broadcast %27 : vector<1x128xf32> to vector<8x128xf32>
    %44 = arith.subf %42, %43 : vector<8x128xf32>
    %45 = math.absf %44 : vector<8x128xf32>
    %46 = arith.addf %41, %45 : vector<8x128xf32>
    %cst_13 = arith.constant 5.000000e-01 : f32
    %47 = vector.broadcast %cst_13 : f32 to vector<8x1xf32>
    %48 = arith.mulf %22, %47 : vector<8x1xf32>
    %cst_14 = arith.constant 5.000000e-01 : f32
    %49 = vector.broadcast %cst_14 : f32 to vector<8x1xf32>
    %50 = arith.mulf %23, %49 : vector<8x1xf32>
    %cst_15 = arith.constant 5.000000e-01 : f32
    %51 = vector.broadcast %cst_15 : f32 to vector<1x128xf32>
    %52 = arith.mulf %26, %51 : vector<1x128xf32>
    %cst_16 = arith.constant 5.000000e-01 : f32
    %53 = vector.broadcast %cst_16 : f32 to vector<1x128xf32>
    %54 = arith.mulf %27, %53 : vector<1x128xf32>
    %55 = arith.subf %20, %48 : vector<8x1xf32>
    %56 = arith.addf %20, %48 : vector<8x1xf32>
    %57 = arith.subf %21, %50 : vector<8x1xf32>
    %58 = arith.addf %21, %50 : vector<8x1xf32>
    %59 = arith.subf %24, %52 : vector<1x128xf32>
    %60 = arith.addf %24, %52 : vector<1x128xf32>
    %61 = arith.subf %25, %54 : vector<1x128xf32>
    %62 = arith.addf %25, %54 : vector<1x128xf32>
    %63 = arith.mulf %22, %23 : vector<8x1xf32>
    %64 = arith.mulf %26, %27 : vector<1x128xf32>
    %65 = vector.broadcast %56 : vector<8x1xf32> to vector<8x128xf32>
    %66 = vector.broadcast %60 : vector<1x128xf32> to vector<8x128xf32>
    %67 = arith.minimumf %65, %66 : vector<8x128xf32>
    %68 = vector.broadcast %55 : vector<8x1xf32> to vector<8x128xf32>
    %69 = vector.broadcast %59 : vector<1x128xf32> to vector<8x128xf32>
    %70 = arith.maximumf %68, %69 : vector<8x128xf32>
    %71 = arith.subf %67, %70 : vector<8x128xf32>
    %cst_17 = arith.constant 0.000000e+00 : f32
    %72 = vector.broadcast %cst_17 : f32 to vector<8x128xf32>
    %73 = arith.maximumf %71, %72 : vector<8x128xf32>
    %74 = vector.broadcast %58 : vector<8x1xf32> to vector<8x128xf32>
    %75 = vector.broadcast %62 : vector<1x128xf32> to vector<8x128xf32>
    %76 = arith.minimumf %74, %75 : vector<8x128xf32>
    %77 = vector.broadcast %57 : vector<8x1xf32> to vector<8x128xf32>
    %78 = vector.broadcast %61 : vector<1x128xf32> to vector<8x128xf32>
    %79 = arith.maximumf %77, %78 : vector<8x128xf32>
    %80 = arith.subf %76, %79 : vector<8x128xf32>
    %cst_18 = arith.constant 0.000000e+00 : f32
    %81 = vector.broadcast %cst_18 : f32 to vector<8x128xf32>
    %82 = arith.maximumf %80, %81 : vector<8x128xf32>
    %83 = arith.mulf %73, %82 : vector<8x128xf32>
    %84 = vector.broadcast %63 : vector<8x1xf32> to vector<8x128xf32>
    %85 = vector.broadcast %64 : vector<1x128xf32> to vector<8x128xf32>
    %86 = arith.addf %84, %85 : vector<8x128xf32>
    %87 = arith.subf %86, %83 : vector<8x128xf32>
    %88 = vector.broadcast %56 : vector<8x1xf32> to vector<8x128xf32>
    %89 = vector.broadcast %60 : vector<1x128xf32> to vector<8x128xf32>
    %90 = arith.maximumf %88, %89 : vector<8x128xf32>
    %91 = vector.broadcast %55 : vector<8x1xf32> to vector<8x128xf32>
    %92 = vector.broadcast %59 : vector<1x128xf32> to vector<8x128xf32>
    %93 = arith.minimumf %91, %92 : vector<8x128xf32>
    %94 = arith.subf %90, %93 : vector<8x128xf32>
    %95 = vector.broadcast %58 : vector<8x1xf32> to vector<8x128xf32>
    %96 = vector.broadcast %62 : vector<1x128xf32> to vector<8x128xf32>
    %97 = arith.maximumf %95, %96 : vector<8x128xf32>
    %98 = vector.broadcast %57 : vector<8x1xf32> to vector<8x128xf32>
    %99 = vector.broadcast %61 : vector<1x128xf32> to vector<8x128xf32>
    %100 = arith.minimumf %98, %99 : vector<8x128xf32>
    %101 = arith.subf %97, %100 : vector<8x128xf32>
    %102 = arith.mulf %94, %101 : vector<8x128xf32>
    %cst_19 = arith.constant 1.000000e-07 : f32
    %103 = vector.broadcast %cst_19 : f32 to vector<8x128xf32>
    %104 = arith.addf %87, %103 : vector<8x128xf32>
    %105 = tpu.reciprocal %104 {approx = true} : vector<8x128xf32> -> vector<8x128xf32>
    %cst_20 = arith.constant 1.000000e-07 : f32
    %106 = vector.broadcast %cst_20 : f32 to vector<8x128xf32>
    %107 = arith.addf %102, %106 : vector<8x128xf32>
    %108 = tpu.reciprocal %107 {approx = true} : vector<8x128xf32> -> vector<8x128xf32>
    %109 = arith.mulf %83, %105 : vector<8x128xf32>
    %cst_21 = arith.constant 1.000000e+00 : f32
    %110 = vector.broadcast %cst_21 : f32 to vector<8x128xf32>
    %111 = arith.subf %110, %109 : vector<8x128xf32>
    %112 = arith.subf %102, %87 : vector<8x128xf32>
    %113 = arith.mulf %112, %108 : vector<8x128xf32>
    %114 = arith.addf %111, %113 : vector<8x128xf32>
    %cst_22 = arith.constant 1.000000e+00 : f32
    %115 = vector.broadcast %cst_22 : f32 to vector<8x128xf32>
    %116 = arith.mulf %115, %46 : vector<8x128xf32>
    %117 = arith.addf %15, %116 : vector<8x128xf32>
    %cst_23 = arith.constant 1.000000e+00 : f32
    %118 = vector.broadcast %cst_23 : f32 to vector<8x128xf32>
    %119 = arith.mulf %118, %114 : vector<8x128xf32>
    %120 = arith.addf %117, %119 : vector<8x128xf32>
    %c0_24 = arith.constant 0 : index
    %c0_25 = arith.constant 0 : index
    %c0_26 = arith.constant 0 : index
    %121 = vector.load %arg6[%c0_24, %c0_25, %c0_26] : memref<1x8x128xf32, #tpu.memory_space<vmem>>, vector<1x8x128xf32>
    %122 = vector.shape_cast %121 : vector<1x8x128xf32> to vector<8x128xf32>
    %123 = vector.shape_cast %120 : vector<8x128xf32> to vector<1x8x128xf32>
    tpu.vector_store %arg6[%c0_24, %c0_25, %c0_26], %123 {strides = array<i32>} : memref<1x8x128xf32, #tpu.memory_space<vmem>>, vector<1x8x128xf32>,
    return
  }
  func.func @transform_0(%arg0: i32, %arg1: i32) -> (i32, i32, i32) {
    %c0_i32 = arith.constant 0 : i32
    %c0_i32_0 = arith.constant 0 : i32
    return %arg0, %arg1, %c0_i32 : i32, i32, i32
  }
  func.func @transform_1(%arg0: i32, %arg1: i32) -> (i32, i32, i32) {
    %c0_i32 = arith.constant 0 : i32
    %c0_i32_0 = arith.constant 0 : i32
    %c0_i32_1 = arith.constant 0 : i32
    return %arg0, %c0_i32, %c0_i32_0 : i32, i32, i32
  }
  func.func @transform_2(%arg0: i32, %arg1: i32) -> (i32, i32, i32) {
    %c0_i32 = arith.constant 0 : i32
    %c0_i32_0 = arith.constant 0 : i32
    return %arg0, %arg1, %c0_i32 : i32, i32, i32
  }
  func.func @transform_3(%arg0: i32, %arg1: i32) -> (i32, i32, i32) {
    %c0_i32 = arith.constant 0 : i32
    %c0_i32_0 = arith.constant 0 : i32
    %c0_i32_1 = arith.constant 0 : i32
    return %arg0, %c0_i32, %c0_i32_0 : i32, i32, i32
  }
  func.func @transform_4(%arg0: i32, %arg1: i32) -> (i32, i32, i32) {
    %c0_i32 = arith.constant 0 : i32
    %c0_i32_0 = arith.constant 0 : i32
    return %arg0, %arg1, %c0_i32 : i32, i32, i32
  }
}

</mosaic_0001>

<llo_original>
// kernel: tpu_custom_call.1
$region0: #{tpu_custom_call.1}
  #allocation0 [shape = 'u32[]', space=smem, size = 0x4, offset = 0x4, fixed_abs, tag = 'smem constant byte address 0x4 - core index']
  #allocation1 [shape = 'u32[144,128]{1,0:T(1,128)}', space=vmem, size = 0x12000, scoped, tag = 'internal scratch']
  %s0 = inlined_call_operand.vmem [shape: f32[2,8,128], index: 0, kind: input, shape index: {}]
  %s1 = inlined_call_operand.hbm [shape: bf16[2,128,128], index: 1, kind: input, shape index: {}]
  %s2 = inlined_call_operand.vmem [shape: f32[2,8,4], index: 2, kind: input, shape index: {}]
  %s3 = inlined_call_operand.vmem [shape: f32[2,4,128], index: 3, kind: input, shape index: {}]
  %s4 = inlined_call_operand.hbm [shape: f32[2,8,128], index: 4, kind: output, shape index: {}]
  %s5 = sld [smem:[#allocation0]]
  $region53: #{tpu_custom_call.1} parent=0
    _
  %s7 = ssub.s32 1, %s5
  %s8 = scalar_select 0, %s7, %s5
  $region1: #{tpu_custom_call.1} parent=0
    #allocation2 [shape = 'u8[65536]{0}', space=vmem, size = 0x10000, scoped, tag = 'input window, operand 1']
    #allocation3 [shape = 's32[2]{0}', space=sflag, size = 0x8, scoped, tag = 'scoped memory for tpu_custom_call.1']
    #allocation4 [shape = 's32[2]{0}', space=sflag, size = 0x8, scoped, tag = 'scoped memory for tpu_custom_call.1']
    #allocation5 [shape = 'u8[8192]{0}', space=vmem, size = 0x2000, scoped, tag = 'output window, operand 0']
    %9 = vsyncpa [#allocation3], 0
    %s10 = scalar_lea.sflag [#allocation3], 1
    %11 = vsyncpa %s10, 0
    %12 = vsyncpa [#allocation4], 0
    %s13 = scalar_lea.sflag [#allocation4], 1
    %14 = vsyncpa %s13, 0
    loop: start=0, step=1, limit=4
    $region2: #{tpu_custom_call.1} parent=1 // loop_pre_header
      _
    $region3: #{tpu_custom_call.1} parent=1 // loop_header
      %s16 = sphi 0, %s20
      %p17 = scmp.ge.s32.totalorder %s16, 4
      %s23 = sphi 0, %s35
      %s24 = sphi 0, %s31
      %s25 = sphi 0, %s23
      %s26 = sphi 0, %s24
      %s27 = sphi 0, %s25
      %s28 = sphi 0, %s26
      %s40 = sphi 0, %s42
      %s43 = sphi 0, %s40
      %s44 = sphi 0, %s43
      %s60 = sphi 0, %s44
      %s66 = sphi 0, %s68
      %s69 = sphi 0, %s66
      %s70 = sphi 0, %s69
      %s86 = sphi 0, %s70
      %s94 = sphi 0, %s96
      %s97 = sphi 0, %s94
      %s98 = sphi 0, %s97
      %s114 = sphi 0, %s98
      %s120 = sphi 0, %s122
      %s123 = sphi 0, %s120
      %s124 = sphi 0, %s123
      %s140 = sphi 0, %s124
      %s148 = sphi 0, %s150
      %s151 = sphi 0, %s148
      %s152 = sphi 0, %s151
      %s168 = sphi 0, %s152
    $region4: #{tpu_custom_call.1} parent=1 // loop_header_branch
      %19 = sbr.rel (%p17) target = $region8
    $region5: #{tpu_custom_call.1} parent=1 // loop_body
      %s21 = ssub.s32 %s16, 1
      %s22 = ssub.s32 %s16, 2
      %s29 = sadd.s32 1, %s24
      %p30 = scmp.ge.s32.totalorder %s29, 1
      %s31 = scalar_select %p30, 0, %s29
      %s32 = sadd.s32 1, %s23
      %s33 = scalar_select %p30, %s32, %s23
      %p34 = scmp.ge.s32.totalorder %s33, 2
      %s35 = scalar_select %p34, 0, %s33
      %s36 = ssub.s32 %s23, %s35
      %s37 = ssub.s32 %s24, %s31
      %s38 = sor.u32 %s36, %s37
      %p39 = scmp.eq.s32.totalorder %s38, 0
      %s41 = sadd.s32 %s40, 1
      %s42 = scalar_select %p39, %s40, %s41
      %p45 = pneg %p39
      %p46 = scmp.eq.s32.totalorder %s16, 1
      %p47 = por %p45, %p46
      %p48 = scmp.ne.s32.totalorder %s40, %s43
      %p49 = scmp.eq.s32.totalorder %s16, 0
      %p50 = por %p48, %p49
      %p51 = scmp.ne.s32.totalorder %s40, %s43
      %p52 = scmp.eq.s32.totalorder %s21, 1
      %p53 = por %p51, %p52
      %p54 = scmp.ne.s32.totalorder %s43, %s44
      %p55 = scmp.eq.s32.totalorder %s21, 0
      %p56 = por %p54, %p55
      %p57 = scmp.ne.s32.totalorder %s43, %s44
      %p58 = scmp.eq.s32.totalorder %s22, 1
      %p59 = por %p57, %p58
      %p61 = scmp.ne.s32.totalorder %s44, %s60
      %p62 = scmp.eq.s32.totalorder %s22, 0
      %p63 = por %p61, %p62
      %s64 = ssub.s32 %s23, %s35
      %p65 = scmp.eq.s32.totalorder %s64, 0
      %s67 = sadd.s32 %s66, 1
      %s68 = scalar_select %p65, %s66, %s67
      %p71 = pneg %p65
      %p72 = scmp.eq.s32.totalorder %s16, 1
      %p73 = por %p71, %p72
      %p74 = scmp.ne.s32.totalorder %s66, %s69
      %p75 = scmp.eq.s32.totalorder %s16, 0
      %p76 = por %p74, %p75
      %p77 = scmp.ne.s32.totalorder %s66, %s69
      %p78 = scmp.eq.s32.totalorder %s21, 1
      %p79 = por %p77, %p78
      %p80 = scmp.ne.s32.totalorder %s69, %s70
      %p81 = scmp.eq.s32.totalorder %s21, 0
      %p82 = por %p80, %p81
      %p83 = scmp.ne.s32.totalorder %s69, %s70
      %p84 = scmp.eq.s32.totalorder %s22, 1
      %p85 = por %p83, %p84
      %p87 = scmp.ne.s32.totalorder %s70, %s86
      %p88 = scmp.eq.s32.totalorder %s22, 0
      %p89 = por %p87, %p88
      %s90 = ssub.s32 %s23, %s35
      %s91 = ssub.s32 %s24, %s31
      %s92 = sor.u32 %s90, %s91
      %p93 = scmp.eq.s32.totalorder %s92, 0
      %s95 = sadd.s32 %s94, 1
      %s96 = scalar_select %p93, %s94, %s95
      %p99 = pneg %p93
      %p100 = scmp.eq.s32.totalorder %s16, 1
      %p101 = por %p99, %p100
      %p102 = scmp.ne.s32.totalorder %s94, %s97
      %p103 = scmp.eq.s32.totalorder %s16, 0
      %p104 = por %p102, %p103
      %p105 = scmp.ne.s32.totalorder %s94, %s97
      %p106 = scmp.eq.s32.totalorder %s21, 1
      %p107 = por %p105, %p106
      %p108 = scmp.ne.s32.totalorder %s97, %s98
      %p109 = scmp.eq.s32.totalorder %s21, 0
      %p110 = por %p108, %p109
      %p111 = scmp.ne.s32.totalorder %s97, %s98
      %p112 = scmp.eq.s32.totalorder %s22, 1
      %p113 = por %p111, %p112
      %p115 = scmp.ne.s32.totalorder %s98, %s114
      %p116 = scmp.eq.s32.totalorder %s22, 0
      %p117 = por %p115, %p116
      %s118 = ssub.s32 %s23, %s35
      %p119 = scmp.eq.s32.totalorder %s118, 0
      %s121 = sadd.s32 %s120, 1
      %s122 = scalar_select %p119, %s120, %s121
      %p125 = pneg %p119
      %p126 = scmp.eq.s32.totalorder %s16, 1
      %p127 = por %p125, %p126
      %p128 = scmp.ne.s32.totalorder %s120, %s123
      %p129 = scmp.eq.s32.totalorder %s16, 0
      %p130 = por %p128, %p129
      %p131 = scmp.ne.s32.totalorder %s120, %s123
      %p132 = scmp.eq.s32.totalorder %s21, 1
      %p133 = por %p131, %p132
      %p134 = scmp.ne.s32.totalorder %s123, %s124
      %p135 = scmp.eq.s32.totalorder %s21, 0
      %p136 = por %p134, %p135
      %p137 = scmp.ne.s32.totalorder %s123, %s124
      %p138 = scmp.eq.s32.totalorder %s22, 1
      %p139 = por %p137, %p138
      %p141 = scmp.ne.s32.totalorder %s124, %s140
      %p142 = scmp.eq.s32.totalorder %s22, 0
      %p143 = por %p141, %p142
      %s144 = ssub.s32 %s23, %s35
      %s145 = ssub.s32 %s24, %s31
      %s146 = sor.u32 %s144, %s145
      %p147 = scmp.eq.s32.totalorder %s146, 0
      %s149 = sadd.s32 %s148, 1
      %s150 = scalar_select %p147, %s148, %s149
      %p153 = pneg %p147
      %p154 = scmp.eq.s32.totalorder %s16, 1
      %p155 = por %p153, %p154
      %p156 = scmp.ne.s32.totalorder %s148, %s151
      %p157 = scmp.eq.s32.totalorder %s16, 0
      %p158 = por %p156, %p157
      %p159 = scmp.ne.s32.totalorder %s148, %s151
      %p160 = scmp.eq.s32.totalorder %s21, 1
      %p161 = por %p159, %p160
      %p162 = scmp.ne.s32.totalorder %s151, %s152
      %p163 = scmp.eq.s32.totalorder %s21, 0
      %p164 = por %p162, %p163
      %p165 = scmp.ne.s32.totalorder %s151, %s152
      %p166 = scmp.eq.s32.totalorder %s22, 1
      %p167 = por %p165, %p166
      %p169 = scmp.ne.s32.totalorder %s152, %s168
      %p170 = scmp.eq.s32.totalorder %s22, 0
      %p171 = por %p169, %p170
      %p172 = scmp.le.s32.totalorder 1, %s16
      %p173 = scmp.lt.s32.totalorder %s16, 3
      %p174 = pnand %p172, %p173
      %p175 = pneg %p174
      // Predicated region
      $region9: #{tpu_custom_call.1} parent=5 // pred_check
        _
      $region10: #{tpu_custom_call.1} parent=5 // pred_check_branch
        %177 = sbr.rel (%p174) target = $region12
      $region11: #{tpu_custom_call.1} parent=5 // pred_region
        %s178 = ssub.s32 %s16, 1
      $region12: #{tpu_custom_call.1} parent=5 // pred_fallthru
        _
      %p179 = scmp.lt.s32.totalorder %s16, 2
      // Predicated region
      $region13: #{tpu_custom_call.1} parent=5 // pred_check
        %p180 = pneg %p179
      $region14: #{tpu_custom_call.1} parent=5 // pred_check_branch
        %182 = sbr.rel (%p180) target = $region16
      $region15: #{tpu_custom_call.1} parent=5 // pred_region
        // Predicated region
        $region17: #{tpu_custom_call.1} parent=15 // pred_check
          %p183 = pneg %p50
        $region18: #{tpu_custom_call.1} parent=15 // pred_check_branch
          %185 = sbr.rel (%p183) target = $region20
        $region19: #{tpu_custom_call.1} parent=15 // pred_region
          %p186 = scmp.lt.s32.totalorder %s23, 1
          %s187 = scalar_select %p186, %s23, 1
          %p188 = scmp.lt.s32.totalorder %s24, 0
          %s189 = scalar_select %p188, %s24, 0
          %s190 = sadd.s32 %s189, %s187
          %s191 = smul.addr %s190, 8
          %s192 = scalar_lea.vmem %s0, %s191
        $region20: #{tpu_custom_call.1} parent=15 // pred_fallthru
          _
        // Predicated region
        $region21: #{tpu_custom_call.1} parent=15 // pred_check
          %p193 = pneg %p76
        $region22: #{tpu_custom_call.1} parent=15 // pred_check_branch
          %195 = sbr.rel (%p193) target = $region24
        $region23: #{tpu_custom_call.1} parent=15 // pred_region
          %s196 = sand.u32 %s66, 1
          %s197 = scalar_lea.sflag [#allocation3], %s196
          %s198 = sand.u32 %s66, 1
          %s199 = smul.addr %s198, 64
          %s200 = scalar_lea.vmem [#allocation2], %s199
          %s202 = ssub.s32 1024, 1024
          %203 = vsyncadd %s197, %s202
          %s204 = smul.addr %s23, 16
          %s205 = smul.addr %s204, 64
          %s206 = scalar_lea.hbm %s1, %s205
          %s207 = sshll.u32 %s200, 4
          %s208 = int_to_ptr.vmem [resolvable:$true] %s207
          %213 = dma.hbm_to_vmem [thread:$0]  %s206, 1024, %s208, %s197, 64, 64, 4
        $region24: #{tpu_custom_call.1} parent=15 // pred_fallthru
          _
        // Predicated region
        $region25: #{tpu_custom_call.1} parent=15 // pred_check
          %p214 = pneg %p104
        $region26: #{tpu_custom_call.1} parent=15 // pred_check_branch
          %216 = sbr.rel (%p214) target = $region28
        $region27: #{tpu_custom_call.1} parent=15 // pred_region
          %p217 = scmp.lt.s32.totalorder %s23, 1
          %s218 = scalar_select %p217, %s23, 1
          %p219 = scmp.lt.s32.totalorder %s24, 0
          %s220 = scalar_select %p219, %s24, 0
          %s221 = sadd.s32 %s220, %s218
          %s222 = smul.addr %s221, 8
          %s223 = scalar_lea.vmem %s2, %s222
        $region28: #{tpu_custom_call.1} parent=15 // pred_fallthru
          _
        // Predicated region
        $region29: #{tpu_custom_call.1} parent=15 // pred_check
          %p224 = pneg %p130
        $region30: #{tpu_custom_call.1} parent=15 // pred_check_branch
          %226 = sbr.rel (%p224) target = $region32
        $region31: #{tpu_custom_call.1} parent=15 // pred_region
          %p227 = scmp.lt.s32.totalorder %s23, 1
          %s228 = scalar_select %p227, %s23, 1
          %s229 = smul.addr %s228, 4
          %s230 = scalar_lea.vmem %s3, %s229
        $region32: #{tpu_custom_call.1} parent=15 // pred_fallthru
          _
      $region16: #{tpu_custom_call.1} parent=5 // pred_fallthru
        _
      %p231 = scmp.le.s32.totalorder 1, %s16
      %p232 = scmp.lt.s32.totalorder %s16, 3
      %p233 = pnand %p231, %p232
      %p234 = pneg %p233
      // Predicated region
      $region33: #{tpu_custom_call.1} parent=5 // pred_check
        _
      $region34: #{tpu_custom_call.1} parent=5 // pred_check_branch
        %236 = sbr.rel (%p233) target = $region36
      $region35: #{tpu_custom_call.1} parent=5 // pred_region
        %s237 = ssub.s32 %s16, 1
        %s238 = sand.u32 %s69, 1
        %s239 = scalar_lea.sflag [#allocation3], %s238
        %s240 = sand.u32 %s69, 1
        %s241 = smul.addr %s240, 64
        %s242 = scalar_lea.vmem [#allocation2], %s241
        // Predicated region
        $region37: #{tpu_custom_call.1} parent=35 // pred_check
          %p243 = pneg %p82
        $region38: #{tpu_custom_call.1} parent=35 // pred_check_branch
          %245 = sbr.rel (%p243) target = $region40
        $region39: #{tpu_custom_call.1} parent=35 // pred_region
          %246 = dma.done %s239, 1024
        $region40: #{tpu_custom_call.1} parent=35 // pred_fallthru
          _
        %p247 = scmp.lt.s32.totalorder %s25, 1
        %s248 = scalar_select %p247, %s25, 1
        %p249 = scmp.lt.s32.totalorder %s26, 0
        %s250 = scalar_select %p249, %s26, 0
        %s251 = sadd.s32 %s250, %s248
        %s252 = smul.addr %s251, 8
        %s253 = scalar_lea.vmem %s0, %s252
        %p254 = pneg %p56
        %p255 = pneg %p53
        %s256 = sand.u32 %s69, 1
        %s257 = scalar_lea.sflag [#allocation3], %s256
        %s258 = sand.u32 %s69, 1
        %s259 = smul.addr %s258, 64
        %s260 = scalar_lea.vmem [#allocation2], %s259
        %p261 = pneg %p82
        %p262 = pneg %p79
        %p263 = scmp.lt.s32.totalorder %s25, 1
        %s264 = scalar_select %p263, %s25, 1
        %p265 = scmp.lt.s32.totalorder %s26, 0
        %s266 = scalar_select %p265, %s26, 0
        %s267 = sadd.s32 %s266, %s264
        %s268 = smul.addr %s267, 8
        %s269 = scalar_lea.vmem %s2, %s268
        %p270 = pneg %p110
        %p271 = pneg %p107
        %p272 = scmp.lt.s32.totalorder %s25, 1
        %s273 = scalar_select %p272, %s25, 1
        %s274 = smul.addr %s273, 4
        %s275 = scalar_lea.vmem %s3, %s274
        %p276 = pneg %p136
        %p277 = pneg %p133
        %p278 = pneg %p164
        %p279 = pneg %p161
        %s280 = sand.u32 %s151, 1
        %s281 = scalar_lea.sflag [#allocation4], %s280
        %s282 = sand.u32 %s151, 1
        %s283 = smul.addr %s282, 8
        %s284 = scalar_lea.vmem [#allocation5], %s283
        %p285 = scmp.lt.s32.totalorder %s25, 1
        %s286 = scalar_select %p285, %s25, 1
        %p287 = scmp.lt.s32.totalorder %s26, 0
        %s288 = scalar_select %p287, %s26, 0
        %s289 = sadd.s32 %s288, %s286
        %s290 = smul.addr %s289, 8
        %s291 = scalar_lea.vmem %s0, %s290
        %p292 = scmp.lt.s32.totalorder %s25, 1
        %s293 = scalar_select %p292, %s25, 1
        %p294 = scmp.lt.s32.totalorder %s26, 0
        %s295 = scalar_select %p294, %s26, 0
        %s296 = sadd.s32 %s295, %s293
        %s297 = smul.addr %s296, 8
        %s298 = scalar_lea.vmem %s2, %s297
        %p299 = scmp.lt.s32.totalorder %s25, 1
        %s300 = scalar_select %p299, %s25, 1
        %s301 = smul.addr %s300, 4
        %s302 = scalar_lea.vmem %s3, %s301
        %v304 = vld [vmem:[%s291] sm:$0xff]
        %305 = vmax.xlane.f32.xlu0 %v304
        %v306 = vpop.xlane.xlu0 %305
        %v307 = vsub.f32 %v304, %v306
        %v308 = vmul.f32 %v307, 1.442695
        %v309 = vpow.pop %v308
        %310 = vadd.xlane.f32.xlu0 %v309
        %v311 = vpop.xlane.xlu0 %310
        %v312 = vrcp.pop %v311
        %v313 = vmul.f32 %v309, %v312
        %v314 = vpack.c.bf16 %v313, %v313
        %v315 = vld [vmem:[%s242] sm:$0xf]
        %v316 = vld [vmem:[%s242 + $0x4] sm:$0xf]
        %v317 = vld [vmem:[%s242 + $0x8] sm:$0xf]
        %v318 = vld [vmem:[%s242 + $0xc] sm:$0xf]
        %v319 = vld [vmem:[%s242 + $0x10] sm:$0xf]
        %v320 = vld [vmem:[%s242 + $0x14] sm:$0xf]
        %v321 = vld [vmem:[%s242 + $0x18] sm:$0xf]
        %v322 = vld [vmem:[%s242 + $0x1c] sm:$0xf]
        %v323 = vld [vmem:[%s242 + $0x20] sm:$0xf]
        %v324 = vld [vmem:[%s242 + $0x24] sm:$0xf]
        %v325 = vld [vmem:[%s242 + $0x28] sm:$0xf]
        %v326 = vld [vmem:[%s242 + $0x2c] sm:$0xf]
        %v327 = vld [vmem:[%s242 + $0x30] sm:$0xf]
        %v328 = vld [vmem:[%s242 + $0x34] sm:$0xf]
        %v329 = vld [vmem:[%s242 + $0x38] sm:$0xf]
        %v330 = vld [vmem:[%s242 + $0x3c] sm:$0xf]
        %v331 = vld [vmem:[%s298] sm:$0xff]
        %v332 = vld [vmem:[%s302] sm:$0xf]
        %334 = vset.pattern.permute.xlu0 0
        %335 = vperm.xlu0 %334, %v331
        %v336 = vpop.permute.xlu0 %335
        %v338 = vlaneseq
        %v339 = vshrl.u32 %v338, 7
        %v340 = vsub.s32 0, %v339
        %v341 = vrot.slane %v332, %v340
        %v342 = vsub.f32 %v336, %v341
        %v343 = vand.u32 2147483647, %v342
        %344 = vset.pattern.permute.xlu0 1
        %345 = vperm.xlu0 %344, %v331
        %v346 = vpop.permute.xlu0 %345
        %v348 = vlaneseq
        %v349 = vshrl.u32 %v348, 7
        %v350 = vsub.s32 1, %v349
        %v351 = vrot.slane %v332, %v350
        %v352 = vsub.f32 %v346, %v351
        %v353 = vand.u32 2147483647, %v352
        %v354 = vadd.f32 %v343, %v353
        %355 = vset.pattern.permute.xlu0 2
        %356 = vperm.xlu0 %355, %v331
        %v357 = vpop.permute.xlu0 %356
        %v359 = vlaneseq
        %v360 = vshrl.u32 %v359, 7
        %v361 = vsub.s32 2, %v360
        %v362 = vrot.slane %v332, %v361
        %v363 = vsub.f32 %v357, %v362
        %v364 = vand.u32 2147483647, %v363
        %v365 = vadd.f32 %v354, %v364
        %366 = vset.pattern.permute.xlu0 3
        %367 = vperm.xlu0 %366, %v331
        %v368 = vpop.permute.xlu0 %367
        %v370 = vlaneseq
        %v371 = vshrl.u32 %v370, 7
        %v372 = vsub.s32 3, %v371
        %v373 = vrot.slane %v332, %v372
        %v374 = vsub.f32 %v368, %v373
        %v375 = vand.u32 2147483647, %v374
        %v376 = vadd.f32 %v365, %v375
        %v377 = vmul.f32 %v331, 0.5
        %v378 = vmul.f32 %v332, 0.5
        %380 = vrot.lane.b32.xlu0 %v377, 126
        %v381 = vpop.permute.xlu0 %380
        %v383 = vsub.f32 %v331, %v381
        %v384 = vadd.f32 %v331, %v381
        %v386 = vrot.slane %v378, 2
        %v388 = vsub.f32 %v332, %v386
        %v389 = vadd.f32 %v332, %v386
        %390 = vrot.lane.b32.xlu0 %v331, 127
        %v391 = vpop.permute.xlu0 %390
        %v393 = vmul.f32 %v331, %v391
        %v395 = vrot.slane %v332, 1
        %v397 = vmul.f32 %v332, %v395
        %399 = vset.pattern.permute.xlu0 0
        %400 = vperm.xlu0 %399, %v384
        %v401 = vpop.permute.xlu0 %400
        %v403 = vlaneseq
        %v404 = vshrl.u32 %v403, 7
        %v405 = vsub.s32 0, %v404
        %v406 = vrot.slane %v389, %v405
        %v407 = vmin.f32 %v401, %v406
        %409 = vset.pattern.permute.xlu0 0
        %410 = vperm.xlu0 %409, %v383
        %v411 = vpop.permute.xlu0 %410
        %v413 = vlaneseq
        %v414 = vshrl.u32 %v413, 7
        %v415 = vsub.s32 0, %v414
        %v416 = vrot.slane %v388, %v415
        %v417 = vmax.f32 %v411, %v416
        %v418 = vsub.f32 %v407, %v417
        %v419 = vmax.f32 %v418, 0.0
        %420 = vset.pattern.permute.xlu0 1
        %421 = vperm.xlu0 %420, %v384
        %v422 = vpop.permute.xlu0 %421
        %v424 = vlaneseq
        %v425 = vshrl.u32 %v424, 7
        %v426 = vsub.s32 1, %v425
        %v427 = vrot.slane %v389, %v426
        %v428 = vmin.f32 %v422, %v427
        %429 = vset.pattern.permute.xlu0 1
        %430 = vperm.xlu0 %429, %v383
        %v431 = vpop.permute.xlu0 %430
        %v433 = vlaneseq
        %v434 = vshrl.u32 %v433, 7
        %v435 = vsub.s32 1, %v434
        %v436 = vrot.slane %v388, %v435
        %v437 = vmax.f32 %v431, %v436
        %v438 = vsub.f32 %v428, %v437
        %v439 = vmax.f32 %v438, 0.0
        %v440 = vmul.f32 %v419, %v439
        %442 = vset.pattern.permute.xlu0 2
        %443 = vperm.xlu0 %442, %v393
        %v444 = vpop.permute.xlu0 %443
        %v446 = vlaneseq
        %v447 = vshrl.u32 %v446, 7
        %v448 = vsub.s32 2, %v447
        %v449 = vrot.slane %v397, %v448
        %v450 = vadd.f32 %v444, %v449
        %v451 = vsub.f32 %v450, %v440
        %v452 = vmax.f32 %v401, %v406
        %v453 = vmin.f32 %v411, %v416
        %v454 = vsub.f32 %v452, %v453
        %v455 = vmax.f32 %v422, %v427
        %v456 = vmin.f32 %v431, %v436
        %v457 = vsub.f32 %v455, %v456
        %v458 = vmul.f32 %v454, %v457
        %v459 = vadd.f32 %v451, 1e-07
        %v460 = vrcp.pop %v459
        %v461 = vadd.f32 %v458, 1e-07
        %v462 = vrcp.pop %v461
        %v463 = vmul.f32 %v440, %v460
        %v464 = vsub.f32 1.0, %v463
        %v465 = vsub.f32 %v458, %v451
        %v466 = vmul.f32 %v465, %v462
        %v467 = vadd.f32 %v464, %v466
        %v484 = vunpack.c.l.b16 %v315
        %v485 = vunpack.c.l.b16 %v316
        %v486 = vunpack.c.l.b16 %v317
        %v487 = vunpack.c.l.b16 %v318
        %v488 = vunpack.c.l.b16 %v319
        %v489 = vunpack.c.l.b16 %v320
        %v490 = vunpack.c.l.b16 %v321
        %v491 = vunpack.c.l.b16 %v322
        %v492 = vunpack.c.l.b16 %v323
        %v493 = vunpack.c.l.b16 %v324
        %v494 = vunpack.c.l.b16 %v325
        %v495 = vunpack.c.l.b16 %v326
        %v496 = vunpack.c.l.b16 %v327
        %v497 = vunpack.c.l.b16 %v328
        %v498 = vunpack.c.l.b16 %v329
        %v499 = vunpack.c.l.b16 %v330
        %v500 = vpack.c.b16 %v485, %v484
        %v501 = vpack.c.b16 %v487, %v486
        %v502 = vpack.c.b16 %v489, %v488
        %v503 = vpack.c.b16 %v491, %v490
        %v504 = vpack.c.b16 %v493, %v492
        %v505 = vpack.c.b16 %v495, %v494
        %v506 = vpack.c.b16 %v497, %v496
        %v507 = vpack.c.b16 %v499, %v498
        %516 = vmatprep.subr.bf16.mxu0 0
        %517 = vmatpush1.bf16.msra.mxu0 %v507
        %518 = vmatprep.subr.bf16.mxu0 0
        %519 = vmatpush1.bf16.msra.mxu0 %v506
        %520 = vmatprep.subr.bf16.mxu0 0
        %521 = vmatpush1.bf16.msra.mxu0 %v505
        %522 = vmatprep.subr.bf16.mxu0 0
        %523 = vmatpush1.bf16.msra.mxu0 %v504
        %524 = vmatprep.subr.bf16.mxu0 0
        %525 = vmatpush1.bf16.msra.mxu0 %v503
        %526 = vmatprep.subr.bf16.mxu0 0
        %527 = vmatpush1.bf16.msra.mxu0 %v502
        %528 = vmatprep.subr.bf16.mxu0 0
        %529 = vmatpush1.bf16.msra.mxu0 %v501
        %530 = vmatprep.subr.bf16.mxu0 0
        %531 = vmatpush1.bf16.msra.mxu0 %v500
        %532 = vmatprep.subr.bf16.mxu0 0
        %533 = vmatpush2.bf16.msra.mxu0 0
        %534 = vmatprep.subr.bf16.mxu0 0
        %535 = vmatpush2.bf16.msra.mxu0 0
        %536 = vmatprep.subr.bf16.mxu0 0
        %537 = vmatpush2.bf16.msra.mxu0 0
        %538 = vmatprep.subr.bf16.mxu0 0
        %539 = vmatpush2.bf16.msra.mxu0 0
        %540 = vmatprep.subr.bf16.mxu0 0
        %541 = vmatpush2.bf16.msra.mxu0 0
        %542 = vmatprep.subr.bf16.mxu0 0
        %543 = vmatpush2.bf16.msra.mxu0 0
        %544 = vmatprep.subr.bf16.mxu0 0
        %545 = vmatpush2.bf16.msra.mxu0 0
        %546 = vmatprep.subr.bf16.mxu0 0
        %547 = vmatpush2.bf16.msra.mxu0 0
        %548 = vmatprep.mubr.bf16.mxu0 0
        %549 = vmatmul.mubr.bf16.gmra.mxu0 %v314
        %v550 = vpop.f32.mrf.mxu0
        %v551 = vadd.f32 %v376, %v550
        %v552 = vpop.f32.mrf.mxu0
        %v553 = vpop.f32.mrf.mxu0
        %v554 = vpop.f32.mrf.mxu0
        %555 = vdwg.mxu0
        %v556 = vadd.f32 %v551, %v467
        %557 = vst [vmem:[%s284] sm:$0xff] %v556
        %s558 = sand.u32 %s151, 1
        %s559 = scalar_lea.sflag [#allocation4], %s558
        %s560 = sand.u32 %s151, 1
        %s561 = smul.addr %s560, 8
        %s562 = scalar_lea.vmem [#allocation5], %s561
        // Predicated region
        $region41: #{tpu_custom_call.1} parent=35 // pred_check
          %p563 = pneg %p161
        $region42: #{tpu_custom_call.1} parent=35 // pred_check_branch
          %565 = sbr.rel (%p563) target = $region44
        $region43: #{tpu_custom_call.1} parent=35 // pred_region
          %s567 = ssub.s32 128, 128
          %568 = vsyncadd %s559, %s567
          %s569 = sadd.s32 %s26, %s25
          %s570 = smul.addr %s569, 128
          %s571 = scalar_lea.hbm %s4, %s570
          %s573 = sshll.u32 %s562, 4
          %s574 = int_to_ptr.vmem [resolvable:$true] %s573
          %576 = dma.vmem_to_hbm [thread:$0]  %s574, 128, %s571, %s559
        $region44: #{tpu_custom_call.1} parent=35 // pred_fallthru
          _
      $region36: #{tpu_custom_call.1} parent=5 // pred_fallthru
        _
      %p577 = scmp.le.s32.totalorder 2, %s16
      // Predicated region
      $region45: #{tpu_custom_call.1} parent=5 // pred_check
        %p578 = pneg %p577
      $region46: #{tpu_custom_call.1} parent=5 // pred_check_branch
        %580 = sbr.rel (%p578) target = $region48
      $region47: #{tpu_custom_call.1} parent=5 // pred_region
        %s581 = ssub.s32 %s16, 2
        // Predicated region
        $region49: #{tpu_custom_call.1} parent=47 // pred_check
          %p582 = pneg %p167
        $region50: #{tpu_custom_call.1} parent=47 // pred_check_branch
          %584 = sbr.rel (%p582) target = $region52
        $region51: #{tpu_custom_call.1} parent=47 // pred_region
          %s585 = sand.u32 %s152, 1
          %s586 = scalar_lea.sflag [#allocation4], %s585
          %s587 = sand.u32 %s152, 1
          %s588 = smul.addr %s587, 8
          %s589 = scalar_lea.vmem [#allocation5], %s588
          %590 = dma.done %s586, 128
        $region52: #{tpu_custom_call.1} parent=47 // pred_fallthru
          _
      $region48: #{tpu_custom_call.1} parent=5 // pred_fallthru
        _
    $region6: #{tpu_custom_call.1} parent=1 // loop_footer
      %s20 = sadd.s32 1, %s16
    $region7: #{tpu_custom_call.1} parent=1 // loop_footer_branch
      %15 = sbr.rel target = $region3
    $region8: #{tpu_custom_call.1} parent=1 // loop_exit
      _
    %591 = vsyncpa [#allocation3], 1
    %s592 = scalar_lea.sflag [#allocation3], 1
    %593 = vsyncpa %s592, 1
    %594 = vsyncpa [#allocation4], 1
    %s595 = scalar_lea.sflag [#allocation4], 1
    %596 = vsyncpa %s595, 1

</llo_original>
